<compile_context>
chip_gen: v6e
topology: v6e:2x2x1
jax: 0.10.0
libtpu: 0.0.40
codegen_flags: <defaults>
</compile_context>

<pallas_src>
import functools
import itertools

import numpy as np
import jax
import jax.numpy as jnp
from jax.experimental import pallas as pl
from jax.experimental.pallas import tpu as pltpu


# ----------------------------- kernels --------------------------------------
def _pairwise_sq_dists_kernel(emb_ref, dmat_ref):
    """dmat[i, j] = ||e_i - e_j||^2 via the Gram matrix (reduction dim = D)."""
    e = emb_ref[...].astype(jnp.float32)                              # (N, D)
    d = e.shape[1]
    # G = E @ E^T  (contract over D on the MXU, no explicit transpose).
    g = jax.lax.dot_general(e, e, (((1,), (1,)), ((), ())),
                            preferred_element_type=jnp.float32)       # (N, N)
    e2 = e * e
    col_sq = jnp.sum(e2, axis=1, keepdims=True)                       # (N, 1)
    # Row-oriented squared norms via a ones-matmul (avoids a tiny transpose).
    row_sq = jax.lax.dot_general(jnp.ones((1, d), jnp.float32), e2,
                                 (((1,), (1,)), ((), ())),
                                 preferred_element_type=jnp.float32)  # (1, N)
    dist = col_sq + row_sq - 2.0 * g
    dmat_ref[...] = jnp.maximum(dist, 0.0)   # clamp rounding-noise negatives


def _triplet_tile_kernel(trip_ref, dmat_ref, out_ref, *, margin, num_valid, tile_t):
    """One TILE_T-wide slab of triplets -> partial loss sum (1,1,1)."""
    i = pl.program_id(0)
    n = dmat_ref.shape[0]

    trips = trip_ref[...]                                             # (3, TILE_T) int32
    row_ids = jax.lax.broadcasted_iota(jnp.int32, (n, tile_t), 0)     # sublane = row id

    # Lane-dense one-hot selectors: onehot[j, t] = (index_t == j).
    # (Out-of-range indices silently select nothing, like the original kernel.)
    onehot_a = (trips[0:1, :] == row_ids).astype(jnp.float32)         # (N, TILE_T)
    sel_pn = ((trips[1:2, :] == row_ids).astype(jnp.float32)
              - (trips[2:3, :] == row_ids).astype(jnp.float32))       # (N, TILE_T)

    # col_a[j, t] = d(j, a_t)   (Dmat is symmetric).
    col_a = jnp.dot(dmat_ref[...], onehot_a,
                    preferred_element_type=jnp.float32)               # (N, TILE_T)

    # ap_t - an_t = sum_j d(j, a_t) * (onehot_p - onehot_n)[j, t]  (sublane reduce)
    diff = jnp.sum(col_a * sel_pn, axis=0, keepdims=True)             # (1, TILE_T)
    losses = jnp.maximum(diff + jnp.float32(margin), 0.0)

    # Mask padded lanes so they contribute exactly 0 to the sum.
    gidx = i * tile_t + jax.lax.broadcasted_iota(jnp.int32, (1, tile_t), 1)
    losses = jnp.where(gidx < num_valid, losses, jnp.float32(0.0))

    out_ref[...] = jnp.sum(losses, axis=1, keepdims=True).reshape(1, 1, 1)


# ----------------------------- wrapper ---------------------------------------
def online_triplet_loss(embeddings, triplets, margin, *, tile_t=512):
    """Pallas equivalent of OnlineTripletLoss.forward given precomputed triplets.

    Returns (mean_loss, num_triplets).  `tile_t` should be re-derived per chip
    (v7x has half the VMEM of v6e); it is rounded down to a lane multiple.
    """
    T = int(triplets.shape[0])
    if T == 0:
        # Guard division by zero (PyTorch would return NaN from mean of empty).
        return jnp.float32(0.0), 0

    embeddings = jnp.asarray(embeddings, jnp.float32)
    N, _ = embeddings.shape

    # 1) Pairwise squared-distance matrix, computed once per call.
    dmat = pl.pallas_call(
        _pairwise_sq_dists_kernel,
        out_shape=jax.ShapeDtypeStruct((N, N), jnp.float32),
        in_specs=[pl.BlockSpec(memory_space=pltpu.MemorySpace.VMEM)],
        out_specs=pl.BlockSpec(memory_space=pltpu.MemorySpace.VMEM),
    )(embeddings)

    # 2) Tiled, parallel triplet loss.
    tile_t = max(128, (int(tile_t) // 128) * 128)
    t_pad = ((T + tile_t - 1) // tile_t) * tile_t
    num_tiles = t_pad // tile_t

    trips_t = jnp.transpose(jnp.asarray(triplets, jnp.int32))          # (3, T) lane-dense
    if t_pad != T:
        trips_t = jnp.pad(trips_t, ((0, 0), (0, t_pad - T)))

    kernel = functools.partial(_triplet_tile_kernel, margin=float(margin),
                               num_valid=T, tile_t=tile_t)
    partials = pl.pallas_call(
        kernel,
        out_shape=jax.ShapeDtypeStruct((num_tiles, 1, 1), jnp.float32),
        grid=(num_tiles,),
        in_specs=[
            pl.BlockSpec((3, tile_t), lambda i: (0, i)),    # triplet index tile
            pl.BlockSpec((N, N), lambda i: (0, 0)),         # resident distance matrix
        ],
        out_specs=pl.BlockSpec((1, 1, 1), lambda i: (i, 0, 0)),
        compiler_params=pltpu.CompilerParams(
            dimension_semantics=("parallel",),              # 2 TCs on v7x
            vmem_limit_bytes=32 * 1024 * 1024,              # raise scoped VMEM (v5e default 16 MiB)
        ),
    )(trips_t, dmat)

    loss = jnp.sum(partials) * jnp.float32(1.0 / T)
    return loss, T


# --- host-side "triplet_selector" (AllTripletSelector semantics) -------------
# TODO(synk): the triplet_selector is arbitrary data-dependent host Python in
# the PyTorch module; it has no clean Pallas equivalent and is kept as glue.
def all_triplets(labels):
    labels = np.asarray(labels)
    trips = []
    for lbl in np.unique(labels):
        pos = np.where(labels == lbl)[0]
        neg = np.where(labels != lbl)[0]
        for a, p in itertools.combinations(pos, 2):
            for n in neg:
                trips.append((a, p, n))
    return np.asarray(trips, dtype=np.int32)


def _reference_loss(emb, trips, margin):
    a = emb[trips[:, 0]]
    p = emb[trips[:, 1]]
    n = emb[trips[:, 2]]
    ap = jnp.sum((a - p) ** 2, axis=1)
    an = jnp.sum((a - n) ** 2, axis=1)
    return jnp.mean(jnp.maximum(ap - an + margin, 0.0))


if __name__ == "__main__":
    key = jax.random.PRNGKey(0)
    batch, dim = 16, 32
    margin = 1.0

    embeddings = jax.random.normal(key, (batch, dim), dtype=jnp.float32)
    labels = np.array([0] * 8 + [1] * 8, dtype=np.int32)

    triplets_np = all_triplets(labels)          # (448, 3)

    # tile_t=128 so the toy size exercises a multi-step grid + padded-lane masking.
    loss, n_triplets = online_triplet_loss(embeddings, triplets_np, margin, tile_t=128)
    loss = jax.block_until_ready(loss)

    ref = jax.block_until_ready(
        _reference_loss(embeddings, jnp.asarray(triplets_np), margin))
    assert n_triplets == triplets_np.shape[0]
    np.testing.assert_allclose(np.asarray(loss), np.asarray(ref), rtol=1e-4, atol=1e-4)

    print("KERNEL_OK")
</pallas_src>

<mosaic_0001>
module attributes {stable_mosaic.version = 11 : i64} {
  func.func @_pairwise_sq_dists_kernel(%arg0: memref<16x32xf32, #tpu.memory_space<vmem>>, %arg1: memref<16x16xf32, #tpu.memory_space<vmem>>) attributes {dimension_semantics = [], scalar_prefetch = 0 : i64, scratch_operands = 0 : i64, tpu.core_type = #tpu.core_type<tc>} {
    %c0 = arith.constant 0 : index
    %c0_0 = arith.constant 0 : index
    %0 = vector.load %arg0[%c0, %c0_0] : memref<16x32xf32, #tpu.memory_space<vmem>>, vector<16x32xf32>
    %cst = arith.constant dense<0.000000e+00> : vector<16x16xf32>
    %1 = tpu.matmul %0, %0, %cst {dimension_numbers = #tpu.dot_dimension_numbers<[1], [1], [0], [0], [0, 0, 1, 0], [], []>} : vector<16x32xf32>, vector<16x32xf32>, vector<16x16xf32> -> vector<16x16xf32>
    %2 = arith.mulf %0, %0 : vector<16x32xf32>
    %cst_1 = arith.constant dense<0.000000e+00> : vector<16xf32>
    %3 = vector.multi_reduction <add>, %2, %cst_1 [1] : vector<16x32xf32> to vector<16xf32>
    %4 = vector.shape_cast %3 : vector<16xf32> to vector<16x1xf32>
    %cst_2 = arith.constant 1.000000e+00 : f32
    %5 = vector.broadcast %cst_2 : f32 to vector<1x32xf32>
    %cst_3 = arith.constant dense<0.000000e+00> : vector<1x16xf32>
    %6 = tpu.matmul %5, %2, %cst_3 {dimension_numbers = #tpu.dot_dimension_numbers<[1], [1], [0], [0], [0, 0, 1, 0], [], []>} : vector<1x32xf32>, vector<16x32xf32>, vector<1x16xf32> -> vector<1x16xf32>
    %7 = vector.broadcast %4 : vector<16x1xf32> to vector<16x16xf32>
    %8 = vector.broadcast %6 : vector<1x16xf32> to vector<16x16xf32>
    %9 = arith.addf %7, %8 : vector<16x16xf32>
    %cst_4 = arith.constant 2.000000e+00 : f32
    %10 = vector.broadcast %cst_4 : f32 to vector<16x16xf32>
    %11 = arith.mulf %10, %1 : vector<16x16xf32>
    %12 = arith.subf %9, %11 : vector<16x16xf32>
    %cst_5 = arith.constant 0.000000e+00 : f32
    %13 = vector.broadcast %cst_5 : f32 to vector<16x16xf32>
    %14 = arith.maximumf %12, %13 : vector<16x16xf32>
    %c0_6 = arith.constant 0 : index
    %c0_7 = arith.constant 0 : index
    %15 = vector.load %arg1[%c0_6, %c0_7] : memref<16x16xf32, #tpu.memory_space<vmem>>, vector<16x16xf32>
    tpu.vector_store %arg1[%c0_6, %c0_7], %14 {strides = array<i32>} : memref<16x16xf32, #tpu.memory_space<vmem>>, vector<16x16xf32>,
    return
  }
}

</mosaic_0001>

<llo_original>
// kernel: tpu_custom_call.1
$region0: #{tpu_custom_call.1}
  #allocation0 [shape = 'u32[]', space=smem, size = 0x4, offset = 0x4, fixed_abs, tag = 'smem constant byte address 0x4 - core index']
  #allocation1 [shape = 'u32[144,128]{1,0:T(1,128)}', space=vmem, size = 0x12000, scoped, tag = 'internal scratch']
  %s0 = inlined_call_operand.hbm [shape: f32[16,32], index: 0, kind: input, shape index: {}]
  %s1 = inlined_call_operand.hbm [shape: f32[16,16], index: 1, kind: output, shape index: {}]
  %s2 = sld [smem:[#allocation0]]
  $region18: #{tpu_custom_call.1} parent=0
    _
  %s4 = ssub.s32 1, %s2
  %s5 = scalar_select 0, %s4, %s2
  $region1: #{tpu_custom_call.1} parent=0
    #allocation2 [shape = 'u8[8192]{0}', space=vmem, size = 0x2000, scoped, tag = 'input window, operand 0, single buffered']
    #allocation3 [shape = 's32[1]{0}', space=sflag, size = 0x4, scoped, tag = 'scoped memory for tpu_custom_call.1']
    #allocation4 [shape = 's32[1]{0}', space=sflag, size = 0x4, scoped, tag = 'scoped memory for tpu_custom_call.1']
    #allocation5 [shape = 'u8[8192]{0}', space=vmem, size = 0x2000, scoped, tag = 'output window, operand 0, single buffered']
    %6 = vsyncpa [#allocation3], 0
    %7 = vsyncpa [#allocation4], 0
    // Predicated region
    $region2: #{tpu_custom_call.1} parent=1 // pred_check
      _
    $region3: #{tpu_custom_call.1} parent=1 // pred_check_branch
      %9 = sbr.rel (0) target = $region5
    $region4: #{tpu_custom_call.1} parent=1 // pred_region
      %s11 = ssub.s32 256, 256
      %12 = vsyncadd [#allocation3], %s11
      %s13 = sshll.u32 [#allocation2], 4
      %s14 = int_to_ptr.vmem [resolvable:$true] %s13
      %19 = dma.hbm_to_vmem [thread:$0]  %s0, 256, %s14, [#allocation3], 128, 128, 8
    $region5: #{tpu_custom_call.1} parent=1 // pred_fallthru
      _
    // Predicated region
    $region6: #{tpu_custom_call.1} parent=1 // pred_check
      _
    $region7: #{tpu_custom_call.1} parent=1 // pred_check_branch
      %21 = sbr.rel (0) target = $region9
    $region8: #{tpu_custom_call.1} parent=1 // pred_region
      %22 = dma.done [#allocation3], 256
    $region9: #{tpu_custom_call.1} parent=1 // pred_fallthru
      _
    %v23 = vld [vmem:[#allocation2] sm:$0xff]
    %v24 = vld [vmem:[#allocation2 + $0x8] sm:$0xff]
    %vm25 = vcmask 261120
    %v27 = vsel %vm25, %v23, 0
    %v30 = vsel %vm25, %v24, 0
    %32 = vmatprep.subr.mxu0 0.0
    %33 = vmatpush1.xpose.msra.mxu0 0.0
    %34 = vmatprep.subr.mxu0 0.0
    %35 = vmatpush1.xpose.msra.mxu0 0.0
    %36 = vmatprep.subr.mxu0 0.0
    %37 = vmatpush1.xpose.msra.mxu0 0.0
    %38 = vmatprep.subr.mxu0 0.0
    %39 = vmatpush1.xpose.msra.mxu0 0.0
    %40 = vmatprep.subr.mxu0 0.0
    %41 = vmatpush1.xpose.msra.mxu0 0.0
    %42 = vmatprep.subr.mxu0 0.0
    %43 = vmatpush1.xpose.msra.mxu0 0.0
    %44 = vmatprep.subr.mxu0 0.0
    %45 = vmatpush1.xpose.msra.mxu0 0.0
    %46 = vmatprep.subr.mxu0 0.0
    %47 = vmatpush1.xpose.msra.mxu0 0.0
    %48 = vmatprep.subr.mxu0 0.0
    %49 = vmatpush1.xpose.msra.mxu0 0.0
    %50 = vmatprep.subr.mxu0 0.0
    %51 = vmatpush1.xpose.msra.mxu0 0.0
    %52 = vmatprep.subr.mxu0 0.0
    %53 = vmatpush1.xpose.msra.mxu0 0.0
    %54 = vmatprep.subr.mxu0 0.0
    %55 = vmatpush1.xpose.msra.mxu0 0.0
    %56 = vmatprep.subr.mxu0 0.0
    %57 = vmatpush1.xpose.msra.mxu0 0.0
    %58 = vmatprep.subr.mxu0 0.0
    %59 = vmatpush1.xpose.msra.mxu0 0.0
    %60 = vmatprep.subr.mxu0 0.0
    %61 = vmatpush1.xpose.msra.mxu0 %v30
    %62 = vmatprep.subr.mxu0 0.0
    %63 = vmatpush1.xpose.msra.mxu0 %v27
    %64 = vmatprep.subr.mxu0 0.0
    %65 = vmatpush2.xpose.msra.mxu0 0.0
    %66 = vmatprep.subr.mxu0 0.0
    %67 = vmatpush2.xpose.msra.mxu0 0.0
    %68 = vmatprep.subr.mxu0 0.0
    %69 = vmatpush2.xpose.msra.mxu0 0.0
    %70 = vmatprep.subr.mxu0 0.0
    %71 = vmatpush2.xpose.msra.mxu0 0.0
    %72 = vmatprep.subr.mxu0 0.0
    %73 = vmatpush2.xpose.msra.mxu0 0.0
    %74 = vmatprep.subr.mxu0 0.0
    %75 = vmatpush2.xpose.msra.mxu0 0.0
    %76 = vmatprep.subr.mxu0 0.0
    %77 = vmatpush2.xpose.msra.mxu0 0.0
    %78 = vmatprep.subr.mxu0 0.0
    %79 = vmatpush2.xpose.msra.mxu0 0.0
    %80 = vmatprep.subr.mxu0 0.0
    %81 = vmatpush2.xpose.msra.mxu0 0.0
    %82 = vmatprep.subr.mxu0 0.0
    %83 = vmatpush2.xpose.msra.mxu0 0.0
    %84 = vmatprep.subr.mxu0 0.0
    %85 = vmatpush2.xpose.msra.mxu0 0.0
    %86 = vmatprep.subr.mxu0 0.0
    %87 = vmatpush2.xpose.msra.mxu0 0.0
    %88 = vmatprep.subr.mxu0 0.0
    %89 = vmatpush2.xpose.msra.mxu0 0.0
    %90 = vmatprep.subr.mxu0 0.0
    %91 = vmatpush2.xpose.msra.mxu0 0.0
    %92 = vmatprep.subr.mxu0 0.0
    %93 = vmatpush2.xpose.msra.mxu0 0.0
    %94 = vmatprep.subr.mxu0 0.0
    %95 = vmatpush2.xpose.msra.mxu0 0.0
    %96 = vmatprep.mubr.f32.mxu0 0.0
    %97 = vmatmul.mubr.f32.gmra.mxu0 %v27
    %v98 = vpop.f32.mrf.mxu0
    %v99 = vadd.f32 0.0, %v98
    %v100 = vpop.f32.mrf.mxu0
    %101 = vmatprep.mubr.f32.mxu0 0.0
    %102 = vmatmul.mubr.f32.gmra.mxu0 %v30
    %v103 = vpop.f32.mrf.mxu0
    %v104 = vadd.f32 0.0, %v103
    %v105 = vpop.f32.mrf.mxu0
    %106 = vdwg.mxu0
    %v107 = vmul.f32 %v23, %v23
    %v108 = vmul.f32 %v24, %v24
    %v109 = vsel %vm25, %v107, 0.0
    %110 = vadd.xlane.f32.xlu0 %v109
    %v111 = vpop.xlane.xlu0 %110
    %v112 = vsel %vm25, %v108, 0.0
    %113 = vadd.xlane.f32.xlu0 %v112
    %v114 = vpop.xlane.xlu0 %113
    %v116 = vsel %vm25, 1.0, 0
    %v119 = vsel %vm25, %v107, 0
    %v122 = vsel %vm25, %v108, 0
    %124 = vmatprep.subr.mxu0 0.0
    %125 = vmatpush1.xpose.msra.mxu0 0.0
    %126 = vmatprep.subr.mxu0 0.0
    %127 = vmatpush1.xpose.msra.mxu0 0.0
    %128 = vmatprep.subr.mxu0 0.0
    %129 = vmatpush1.xpose.msra.mxu0 0.0
    %130 = vmatprep.subr.mxu0 0.0
    %131 = vmatpush1.xpose.msra.mxu0 0.0
    %132 = vmatprep.subr.mxu0 0.0
    %133 = vmatpush1.xpose.msra.mxu0 0.0
    %134 = vmatprep.subr.mxu0 0.0
    %135 = vmatpush1.xpose.msra.mxu0 0.0
    %136 = vmatprep.subr.mxu0 0.0
    %137 = vmatpush1.xpose.msra.mxu0 0.0
    %138 = vmatprep.subr.mxu0 0.0
    %139 = vmatpush1.xpose.msra.mxu0 0.0
    %140 = vmatprep.subr.mxu0 0.0
    %141 = vmatpush1.xpose.msra.mxu0 0.0
    %142 = vmatprep.subr.mxu0 0.0
    %143 = vmatpush1.xpose.msra.mxu0 0.0
    %144 = vmatprep.subr.mxu0 0.0
    %145 = vmatpush1.xpose.msra.mxu0 0.0
    %146 = vmatprep.subr.mxu0 0.0
    %147 = vmatpush1.xpose.msra.mxu0 0.0
    %148 = vmatprep.subr.mxu0 0.0
    %149 = vmatpush1.xpose.msra.mxu0 0.0
    %150 = vmatprep.subr.mxu0 0.0
    %151 = vmatpush1.xpose.msra.mxu0 0.0
    %152 = vmatprep.subr.mxu0 0.0
    %153 = vmatpush1.xpose.msra.mxu0 %v122
    %154 = vmatprep.subr.mxu0 0.0
    %155 = vmatpush1.xpose.msra.mxu0 %v119
    %156 = vmatprep.subr.mxu0 0.0
    %157 = vmatpush2.xpose.msra.mxu0 0.0
    %158 = vmatprep.subr.mxu0 0.0
    %159 = vmatpush2.xpose.msra.mxu0 0.0
    %160 = vmatprep.subr.mxu0 0.0
    %161 = vmatpush2.xpose.msra.mxu0 0.0
    %162 = vmatprep.subr.mxu0 0.0
    %163 = vmatpush2.xpose.msra.mxu0 0.0
    %164 = vmatprep.subr.mxu0 0.0
    %165 = vmatpush2.xpose.msra.mxu0 0.0
    %166 = vmatprep.subr.mxu0 0.0
    %167 = vmatpush2.xpose.msra.mxu0 0.0
    %168 = vmatprep.subr.mxu0 0.0
    %169 = vmatpush2.xpose.msra.mxu0 0.0
    %170 = vmatprep.subr.mxu0 0.0
    %171 = vmatpush2.xpose.msra.mxu0 0.0
    %172 = vmatprep.subr.mxu0 0.0
    %173 = vmatpush2.xpose.msra.mxu0 0.0
    %174 = vmatprep.subr.mxu0 0.0
    %175 = vmatpush2.xpose.msra.mxu0 0.0
    %176 = vmatprep.subr.mxu0 0.0
    %177 = vmatpush2.xpose.msra.mxu0 0.0
    %178 = vmatprep.subr.mxu0 0.0
    %179 = vmatpush2.xpose.msra.mxu0 0.0
    %180 = vmatprep.subr.mxu0 0.0
    %181 = vmatpush2.xpose.msra.mxu0 0.0
    %182 = vmatprep.subr.mxu0 0.0
    %183 = vmatpush2.xpose.msra.mxu0 0.0
    %184 = vmatprep.subr.mxu0 0.0
    %185 = vmatpush2.xpose.msra.mxu0 0.0
    %186 = vmatprep.subr.mxu0 0.0
    %187 = vmatpush2.xpose.msra.mxu0 0.0
    %188 = vmatprep.mubr.f32.mxu0 0.0
    %189 = vmatmul.mubr.f32.gmra.mxu0 %v116
    %v190 = vpop.f32.mrf.mxu0
    %v191 = vadd.f32 0.0, %v190
    %v192 = vpop.f32.mrf.mxu0
    %193 = vdwg.mxu0
    %v194 = vlaneseq
    %v195 = vshrl.u32 %v194, 7
    %v196 = vsub.s32 0, %v195
    %v197 = vrot.slane %v191, %v196
    %v198 = vadd.f32 %v111, %v197
    %v199 = vadd.f32 %v114, %v197
    %v200 = vmul.f32 %v99, 2.0
    %v201 = vmul.f32 %v104, 2.0
    %v202 = vsub.f32 %v198, %v200
    %v203 = vsub.f32 %v199, %v201
    %v204 = vmax.f32 %v202, 0.0
    %v205 = vmax.f32 %v203, 0.0
    %vm206 = vcmask 130048
    %207 = vst.msk [vmem:[#allocation5] sm:$0xff] %vm206, %v204
    %208 = vst.msk [vmem:[#allocation5 + $0x8] sm:$0xff] %vm206, %v205
    // Predicated region
    $region10: #{tpu_custom_call.1} parent=1 // pred_check
      _
    $region11: #{tpu_custom_call.1} parent=1 // pred_check_branch
      %210 = sbr.rel (0) target = $region13
    $region12: #{tpu_custom_call.1} parent=1 // pred_region
      %s212 = ssub.s32 256, 256
      %213 = vsyncadd [#allocation4], %s212
      %s214 = sshll.u32 [#allocation5], 4
      %s215 = int_to_ptr.vmem [resolvable:$true] %s214
      %220 = dma.vmem_to_hbm [thread:$0]  %s215, 256, %s1, [#allocation4], 128, 128, 8
    $region13: #{tpu_custom_call.1} parent=1 // pred_fallthru
      _
    // Predicated region
    $region14: #{tpu_custom_call.1} parent=1 // pred_check
      _
    $region15: #{tpu_custom_call.1} parent=1 // pred_check_branch
      %222 = sbr.rel (0) target = $region17
    $region16: #{tpu_custom_call.1} parent=1 // pred_region
      %223 = dma.done [#allocation4], 256
    $region17: #{tpu_custom_call.1} parent=1 // pred_fallthru
      _
    %224 = vsyncpa [#allocation3], 1
    %225 = vsyncpa [#allocation4], 1

</llo_original>
